<compile_context>
chip_gen: v7x
topology: tpu7x:2x2x1
jax: 0.10.0
libtpu: 0.0.40
codegen_flags: <defaults>
</compile_context>

<pallas_src>
import jax
import jax.numpy as jnp
from jax.experimental import pallas as pl
from jax.experimental.pallas import tpu as pltpu

EPS = 1e-5


def _residual_block_kernel(
    x_ref,     # (Cin, M)        activations, M on the lane axis
    wc_ref,    # (2*Cout, Cin)   fused conv weights [w1; wd]
    w2_ref,    # (Cout, Cout)    conv2 weight
    bn_ref,    # (2*Cout, 4)     packed BN params: [[g1;gd],[be1;bed],[g2;0],[be2;0]]
    o_ref,     # (Cout, M)
):
    x = x_ref[...]
    m = x.shape[-1]
    inv_m = 1.0 / m                      # static Python float
    cout = o_ref.shape[0]

    bn = bn_ref[...]
    g_cat = bn[:, 0:1]                   # (2*Cout, 1)  [g1; gd]
    be_cat = bn[:, 1:2]                  # (2*Cout, 1)  [be1; bed]
    g2 = bn[:cout, 2:3]                  # (Cout, 1)
    be2 = bn[:cout, 3:4]                 # (Cout, 1)

    # Fused conv1 + downsample 1x1 convs: one MXU matmul consumes x.
    # Conv biases omitted: exactly cancelled by the BN mean subtraction that follows.
    hc = jnp.dot(wc_ref[...], x, preferred_element_type=jnp.float32)   # (2*Cout, M)

    # bn1 + bn_downsample together: ONE reduction pass over (2*Cout, M) (XLU),
    # ONE fused scale/shift pass (VPU).  Training-mode BN, biased variance.
    s = jnp.sum(hc, axis=-1, keepdims=True)
    ss = jnp.sum(hc * hc, axis=-1, keepdims=True)
    mean = s * inv_m
    var = jnp.maximum(ss * inv_m - mean * mean, 0.0)   # clamp: one-pass var can dip <0
    scale = g_cat * jax.lax.rsqrt(var + EPS)           # rsqrt -> EUP slot
    shift = be_cat - mean * scale
    hcn = hc * scale + shift                            # (2*Cout, M) single VPU pass

    h1 = jnp.maximum(hcn[:cout, :], 0.0)   # ReLU only on the conv1 half
    idn = hcn[cout:, :]                    # downsample branch (no ReLU)

    # conv2 -> bn2
    h2 = jnp.dot(w2_ref[...], h1, preferred_element_type=jnp.float32)  # (Cout, M)
    s2 = jnp.sum(h2, axis=-1, keepdims=True)
    ss2 = jnp.sum(h2 * h2, axis=-1, keepdims=True)
    mean2 = s2 * inv_m
    var2 = jnp.maximum(ss2 * inv_m - mean2 * mean2, 0.0)
    scale2 = g2 * jax.lax.rsqrt(var2 + EPS)
    shift2 = be2 - mean2 * scale2

    # bn2 + residual add + ReLU, lane-dense unmasked store.
    o_ref[...] = jnp.maximum(h2 * scale2 + shift2 + idn, 0.0)


def residual_block_pallas(x_nchw, params):
    """x_nchw: (N, Cin, H, W) float32. Returns (N, Cout, H, W) float32."""
    N, Cin, H, W = x_nchw.shape
    Cout = params["w1"].shape[0]
    HW = H * W
    M = N * HW

    # NCHW -> (Cin, M): only a leading-dim (N, Cin) swap; HW rows stay contiguous.
    x_cm = jnp.swapaxes(x_nchw.reshape(N, Cin, HW), 0, 1).reshape(Cin, M)

    # Fuse the two matmuls that consume x: [w1; wd] -> (2*Cout, Cin).
    w_fused = jnp.concatenate([params["w1"], params["wd"]], axis=0)

    # Pack the six BN vectors into one (2*Cout, 4) array -> a single input DMA.
    zeros = jnp.zeros((Cout, 1), jnp.float32)
    bn_packed = jnp.concatenate(
        [
            jnp.concatenate([params["g1"], params["gd"]], axis=0),
            jnp.concatenate([params["be1"], params["bed"]], axis=0),
            jnp.concatenate([params["g2"], zeros], axis=0),
            jnp.concatenate([params["be2"], zeros], axis=0),
        ],
        axis=1,
    )

    args = (x_cm, w_fused, params["w2"], bn_packed)

    # Small problem: whole-array VMEM-resident blocks, single grid point.
    out_cm = pl.pallas_call(
        _residual_block_kernel,
        out_shape=jax.ShapeDtypeStruct((Cout, M), jnp.float32),
        in_specs=[pl.BlockSpec(memory_space=pltpu.MemorySpace.VMEM)] * len(args),
        out_specs=pl.BlockSpec(memory_space=pltpu.MemorySpace.VMEM),
        compiler_params=pltpu.CompilerParams(vmem_limit_bytes=32 * 1024 * 1024),
    )(*args)

    # (Cout, M) -> (Cout, N, HW) -> (N, Cout, H, W): leading-dim swap + free reshapes.
    return jnp.swapaxes(out_cm.reshape(Cout, N, HW), 0, 1).reshape(N, Cout, H, W)


def init_params(key, in_channels, out_channels):
    """Deterministic synthetic parameters (PyTorch-like init; BN affine at defaults)."""
    k1, k2, k3, k4, k5, k6 = jax.random.split(key, 6)
    s1 = 1.0 / jnp.sqrt(in_channels)
    s2 = 1.0 / jnp.sqrt(out_channels)
    ones = jnp.ones((out_channels, 1), jnp.float32)
    zeros = jnp.zeros((out_channels, 1), jnp.float32)
    return {
        # Conv weights stored as (Cout, Cin) (PyTorch (Cout, Cin, 1, 1) squeezed).
        "w1": jax.random.uniform(k1, (out_channels, in_channels), jnp.float32, -s1, s1),
        "b1": jax.random.uniform(k2, (out_channels, 1), jnp.float32, -s1, s1),
        "g1": ones, "be1": zeros,
        "w2": jax.random.uniform(k3, (out_channels, out_channels), jnp.float32, -s2, s2),
        "b2": jax.random.uniform(k4, (out_channels, 1), jnp.float32, -s2, s2),
        "g2": ones, "be2": zeros,
        "wd": jax.random.uniform(k5, (out_channels, in_channels), jnp.float32, -s1, s1),
        "bd": jax.random.uniform(k6, (out_channels, 1), jnp.float32, -s1, s1),
        "gd": ones, "bed": zeros,
    }


def residual_block_ref(x_nchw, params):
    """Pure-JAX reference with the full original math (including conv biases)."""
    N, Cin, H, W = x_nchw.shape
    Cout = params["w1"].shape[0]
    HW = H * W
    x = jnp.swapaxes(x_nchw.reshape(N, Cin, HW), 0, 1).reshape(Cin, N * HW)

    def bn(y, g, b):
        m = jnp.mean(y, axis=-1, keepdims=True)
        v = jnp.mean((y - m) ** 2, axis=-1, keepdims=True)
        return (y - m) / jnp.sqrt(v + EPS) * g + b

    h = bn(params["w1"] @ x + params["b1"], params["g1"], params["be1"])
    h = jnp.maximum(h, 0.0)
    h = bn(params["w2"] @ h + params["b2"], params["g2"], params["be2"])
    idn = bn(params["wd"] @ x + params["bd"], params["gd"], params["bed"])
    out = jnp.maximum(h + idn, 0.0)
    return jnp.swapaxes(out.reshape(Cout, N, HW), 0, 1).reshape(N, Cout, H, W)


if __name__ == "__main__":
    key = jax.random.PRNGKey(0)
    kx, kp = jax.random.split(key)

    N, Cin, Cout, H, W = 2, 4, 8, 16, 16   # kernel_size=1, stride=1, downsample active
    x = jax.random.normal(kx, (N, Cin, H, W), jnp.float32)
    params = init_params(kp, Cin, Cout)

    out = residual_block_pallas(x, params)
    out = jax.block_until_ready(out)

    ref = residual_block_ref(x, params)
    assert out.shape == (N, Cout, H, W)
    assert jnp.allclose(out, ref, atol=1e-4, rtol=1e-4), "Pallas output mismatch vs reference"

    print("KERNEL_OK")
</pallas_src>

<mosaic_0001>
module attributes {stable_mosaic.version = 11 : i64} {
  func.func @_residual_block_kernel(%arg0: memref<4x512xf32, #tpu.memory_space<vmem>>, %arg1: memref<16x4xf32, #tpu.memory_space<vmem>>, %arg2: memref<8x8xf32, #tpu.memory_space<vmem>>, %arg3: memref<16x4xf32, #tpu.memory_space<vmem>>, %arg4: memref<8x512xf32, #tpu.memory_space<vmem>>) attributes {dimension_semantics = [], scalar_prefetch = 0 : i64, scratch_operands = 0 : i64, tpu.core_type = #tpu.core_type<tc>} {
    %c0 = arith.constant 0 : index
    %c0_0 = arith.constant 0 : index
    %0 = vector.load %arg0[%c0, %c0_0] : memref<4x512xf32, #tpu.memory_space<vmem>>, vector<4x512xf32>
    %c0_1 = arith.constant 0 : index
    %c0_2 = arith.constant 0 : index
    %1 = vector.load %arg3[%c0_1, %c0_2] : memref<16x4xf32, #tpu.memory_space<vmem>>, vector<16x4xf32>
    %2 = vector.extract_strided_slice %1 {offsets = [0, 0], sizes = [16, 1], strides = [1, 1]} : vector<16x4xf32> to vector<16x1xf32>
    %3 = vector.extract_strided_slice %1 {offsets = [0, 1], sizes = [16, 1], strides = [1, 1]} : vector<16x4xf32> to vector<16x1xf32>
    %4 = vector.extract_strided_slice %1 {offsets = [0, 2], sizes = [8, 1], strides = [1, 1]} : vector<16x4xf32> to vector<8x1xf32>
    %5 = vector.extract_strided_slice %1 {offsets = [0, 3], sizes = [8, 1], strides = [1, 1]} : vector<16x4xf32> to vector<8x1xf32>
    %c0_3 = arith.constant 0 : index
    %c0_4 = arith.constant 0 : index
    %6 = vector.load %arg1[%c0_3, %c0_4] : memref<16x4xf32, #tpu.memory_space<vmem>>, vector<16x4xf32>
    %cst = arith.constant dense<0.000000e+00> : vector<16x512xf32>
    %7 = tpu.matmul %6, %0, %cst {dimension_numbers = #tpu.dot_dimension_numbers<[1], [0], [0], [1], [0, 0, 1, 1], [], []>} : vector<16x4xf32>, vector<4x512xf32>, vector<16x512xf32> -> vector<16x512xf32>
    %cst_5 = arith.constant dense<0.000000e+00> : vector<16xf32>
    %8 = vector.multi_reduction <add>, %7, %cst_5 [1] : vector<16x512xf32> to vector<16xf32>
    %9 = vector.shape_cast %8 : vector<16xf32> to vector<16x1xf32>
    %10 = arith.mulf %7, %7 : vector<16x512xf32>
    %cst_6 = arith.constant dense<0.000000e+00> : vector<16xf32>
    %11 = vector.multi_reduction <add>, %10, %cst_6 [1] : vector<16x512xf32> to vector<16xf32>
    %12 = vector.shape_cast %11 : vector<16xf32> to vector<16x1xf32>
    %cst_7 = arith.constant 0.001953125 : f32
    %13 = vector.broadcast %cst_7 : f32 to vector<16x1xf32>
    %14 = arith.mulf %9, %13 : vector<16x1xf32>
    %cst_8 = arith.constant 0.001953125 : f32
    %15 = vector.broadcast %cst_8 : f32 to vector<16x1xf32>
    %16 = arith.mulf %12, %15 : vector<16x1xf32>
    %17 = arith.mulf %14, %14 : vector<16x1xf32>
    %18 = arith.subf %16, %17 : vector<16x1xf32>
    %cst_9 = arith.constant 0.000000e+00 : f32
    %19 = vector.broadcast %cst_9 : f32 to vector<16x1xf32>
    %20 = arith.maximumf %18, %19 : vector<16x1xf32>
    %cst_10 = arith.constant 9.99999974E-6 : f32
    %21 = vector.broadcast %cst_10 : f32 to vector<16x1xf32>
    %22 = arith.addf %20, %21 : vector<16x1xf32>
    %23 = math.rsqrt %22 : vector<16x1xf32>
    %24 = arith.mulf %2, %23 : vector<16x1xf32>
    %25 = arith.mulf %14, %24 : vector<16x1xf32>
    %26 = arith.subf %3, %25 : vector<16x1xf32>
    %27 = vector.broadcast %24 : vector<16x1xf32> to vector<16x512xf32>
    %28 = arith.mulf %7, %27 : vector<16x512xf32>
    %29 = vector.broadcast %26 : vector<16x1xf32> to vector<16x512xf32>
    %30 = arith.addf %28, %29 : vector<16x512xf32>
    %31 = vector.extract_strided_slice %30 {offsets = [0, 0], sizes = [8, 512], strides = [1, 1]} : vector<16x512xf32> to vector<8x512xf32>
    %cst_11 = arith.constant 0.000000e+00 : f32
    %32 = vector.broadcast %cst_11 : f32 to vector<8x512xf32>
    %33 = arith.maximumf %31, %32 : vector<8x512xf32>
    %34 = vector.extract_strided_slice %30 {offsets = [8, 0], sizes = [8, 512], strides = [1, 1]} : vector<16x512xf32> to vector<8x512xf32>
    %c0_12 = arith.constant 0 : index
    %c0_13 = arith.constant 0 : index
    %35 = vector.load %arg2[%c0_12, %c0_13] : memref<8x8xf32, #tpu.memory_space<vmem>>, vector<8x8xf32>
    %cst_14 = arith.constant dense<0.000000e+00> : vector<8x512xf32>
    %36 = tpu.matmul %35, %33, %cst_14 {dimension_numbers = #tpu.dot_dimension_numbers<[1], [0], [0], [1], [0, 0, 1, 1], [], []>} : vector<8x8xf32>, vector<8x512xf32>, vector<8x512xf32> -> vector<8x512xf32>
    %cst_15 = arith.constant dense<0.000000e+00> : vector<8xf32>
    %37 = vector.multi_reduction <add>, %36, %cst_15 [1] : vector<8x512xf32> to vector<8xf32>
    %38 = vector.shape_cast %37 : vector<8xf32> to vector<8x1xf32>
    %39 = arith.mulf %36, %36 : vector<8x512xf32>
    %cst_16 = arith.constant dense<0.000000e+00> : vector<8xf32>
    %40 = vector.multi_reduction <add>, %39, %cst_16 [1] : vector<8x512xf32> to vector<8xf32>
    %41 = vector.shape_cast %40 : vector<8xf32> to vector<8x1xf32>
    %cst_17 = arith.constant 0.001953125 : f32
    %42 = vector.broadcast %cst_17 : f32 to vector<8x1xf32>
    %43 = arith.mulf %38, %42 : vector<8x1xf32>
    %cst_18 = arith.constant 0.001953125 : f32
    %44 = vector.broadcast %cst_18 : f32 to vector<8x1xf32>
    %45 = arith.mulf %41, %44 : vector<8x1xf32>
    %46 = arith.mulf %43, %43 : vector<8x1xf32>
    %47 = arith.subf %45, %46 : vector<8x1xf32>
    %cst_19 = arith.constant 0.000000e+00 : f32
    %48 = vector.broadcast %cst_19 : f32 to vector<8x1xf32>
    %49 = arith.maximumf %47, %48 : vector<8x1xf32>
    %cst_20 = arith.constant 9.99999974E-6 : f32
    %50 = vector.broadcast %cst_20 : f32 to vector<8x1xf32>
    %51 = arith.addf %49, %50 : vector<8x1xf32>
    %52 = math.rsqrt %51 : vector<8x1xf32>
    %53 = arith.mulf %4, %52 : vector<8x1xf32>
    %54 = arith.mulf %43, %53 : vector<8x1xf32>
    %55 = arith.subf %5, %54 : vector<8x1xf32>
    %56 = vector.broadcast %53 : vector<8x1xf32> to vector<8x512xf32>
    %57 = arith.mulf %36, %56 : vector<8x512xf32>
    %58 = vector.broadcast %55 : vector<8x1xf32> to vector<8x512xf32>
    %59 = arith.addf %57, %58 : vector<8x512xf32>
    %60 = arith.addf %59, %34 : vector<8x512xf32>
    %cst_21 = arith.constant 0.000000e+00 : f32
    %61 = vector.broadcast %cst_21 : f32 to vector<8x512xf32>
    %62 = arith.maximumf %60, %61 : vector<8x512xf32>
    %c0_22 = arith.constant 0 : index
    %c0_23 = arith.constant 0 : index
    %63 = vector.load %arg4[%c0_22, %c0_23] : memref<8x512xf32, #tpu.memory_space<vmem>>, vector<8x512xf32>
    tpu.vector_store %arg4[%c0_22, %c0_23], %62 {strides = array<i32>} : memref<8x512xf32, #tpu.memory_space<vmem>>, vector<8x512xf32>,
    return
  }
}

</mosaic_0001>

<llo_original>
// kernel: tpu_custom_call.1
$region0: #{tpu_custom_call.1}
  #allocation0 [shape = 'u32[]', space=smem, size = 0x4, offset = 0x4, fixed_abs, tag = 'smem constant byte address 0x4 - core index']
  #allocation1 [shape = 'u32[144,128]{1,0:T(1,128)}', space=vmem, size = 0x12000, scoped, tag = 'internal scratch']
  %s0 = inlined_call_operand.vmem [shape: f32[4,512], index: 0, kind: input, shape index: {}]
  %s1 = inlined_call_operand.vmem [shape: f32[16,4], index: 1, kind: input, shape index: {}]
  %s2 = inlined_call_operand.vmem [shape: f32[8,8], index: 2, kind: input, shape index: {}]
  %s3 = inlined_call_operand.vmem [shape: f32[16,4], index: 3, kind: input, shape index: {}]
  %s4 = inlined_call_operand.hbm [shape: f32[8,512], index: 4, kind: output, shape index: {}]
  %s5 = sld [smem:[#allocation0]]
  $region26: #{tpu_custom_call.1} parent=0
    _
  %s7 = ssub.s32 1, %s5
  %s8 = scalar_select 0, %s7, %s5
  $region1: #{tpu_custom_call.1} parent=0
    #allocation2 [shape = 'u8[16384]{0}', space=vmem, size = 0x4000, scoped, tag = 'output window, operand 0, single buffered']
    #allocation3 [shape = 's32[1]{0}', space=sflag, size = 0x4, scoped, tag = 'scoped memory for tpu_custom_call.1']
    %9 = vsyncpa [#allocation3], 0
    // Predicated region
    $region2: #{tpu_custom_call.1} parent=1 // pred_check
      _
    $region3: #{tpu_custom_call.1} parent=1 // pred_check_branch
      %11 = sbr.rel (0) target = $region5
    $region4: #{tpu_custom_call.1} parent=1 // pred_region
      _
    $region5: #{tpu_custom_call.1} parent=1 // pred_fallthru
      _
    // Predicated region
    $region6: #{tpu_custom_call.1} parent=1 // pred_check
      _
    $region7: #{tpu_custom_call.1} parent=1 // pred_check_branch
      %13 = sbr.rel (0) target = $region9
    $region8: #{tpu_custom_call.1} parent=1 // pred_region
      _
    $region9: #{tpu_custom_call.1} parent=1 // pred_fallthru
      _
    // Predicated region
    $region10: #{tpu_custom_call.1} parent=1 // pred_check
      _
    $region11: #{tpu_custom_call.1} parent=1 // pred_check_branch
      %15 = sbr.rel (0) target = $region13
    $region12: #{tpu_custom_call.1} parent=1 // pred_region
      _
    $region13: #{tpu_custom_call.1} parent=1 // pred_fallthru
      _
    // Predicated region
    $region14: #{tpu_custom_call.1} parent=1 // pred_check
      _
    $region15: #{tpu_custom_call.1} parent=1 // pred_check_branch
      %17 = sbr.rel (0) target = $region17
    $region16: #{tpu_custom_call.1} parent=1 // pred_region
      _
    $region17: #{tpu_custom_call.1} parent=1 // pred_fallthru
      _
    %v18 = vld [vmem:[%s0] sm:$0xff]
    %v19 = vld [vmem:[%s0 + $0x8] sm:$0xff]
    %v20 = vld [vmem:[%s3] sm:$0xff]
    %v21 = vld [vmem:[%s3 + $0x8] sm:$0xff]
    %v22 = vld [vmem:[%s1] sm:$0xff]
    %v23 = vld [vmem:[%s1 + $0x8] sm:$0xff]
    %v26 = vcombine.high %v18, %v18
    %v27 = vcombine.high %v19, %v19
    %vm28 = vcmask 31744
    %v30 = vsel %vm28, %v22, 0
    %v33 = vsel %vm28, %v23, 0
    %vm35 = vcmask 1043456
    %v36 = vsel %vm35, %v18, 0
    %v38 = vsel %vm35, %v26, 0
    %v40 = vsel %vm35, %v19, 0
    %v42 = vsel %vm35, %v27, 0
    %44 = vmatprep.subr.mxu0 %v38
    %45 = vmatpush1.msra.mxu0 %v36
    %46 = vmatprep.subr.mxu0 0.0
    %47 = vmatpush1.msra.mxu0 0.0
    %48 = vmatprep.subr.mxu0 0.0
    %49 = vmatpush1.msra.mxu0 0.0
    %50 = vmatprep.subr.mxu0 0.0
    %51 = vmatpush1.msra.mxu0 0.0
    %52 = vmatprep.subr.mxu0 0.0
    %53 = vmatpush1.msra.mxu0 0.0
    %54 = vmatprep.subr.mxu0 0.0
    %55 = vmatpush1.msra.mxu0 0.0
    %56 = vmatprep.subr.mxu0 0.0
    %57 = vmatpush1.msra.mxu0 0.0
    %58 = vmatprep.subr.mxu0 0.0
    %59 = vmatpush1.msra.mxu0 0.0
    %60 = vmatprep.subr.mxu0 0.0
    %61 = vmatpush1.msra.mxu0 0.0
    %62 = vmatprep.subr.mxu0 0.0
    %63 = vmatpush1.msra.mxu0 0.0
    %64 = vmatprep.subr.mxu0 0.0
    %65 = vmatpush1.msra.mxu0 0.0
    %66 = vmatprep.subr.mxu0 0.0
    %67 = vmatpush1.msra.mxu0 0.0
    %68 = vmatprep.subr.mxu0 0.0
    %69 = vmatpush1.msra.mxu0 0.0
    %70 = vmatprep.subr.mxu0 0.0
    %71 = vmatpush1.msra.mxu0 0.0
    %72 = vmatprep.subr.mxu0 0.0
    %73 = vmatpush1.msra.mxu0 0.0
    %74 = vmatprep.subr.mxu0 0.0
    %75 = vmatpush1.msra.mxu0 0.0
    %76 = vmatprep.subr.mxu0 0.0
    %77 = vmatpush1.msra.mxu0 0.0
    %78 = vmatprep.subr.mxu0 0.0
    %79 = vmatpush1.msra.mxu0 0.0
    %80 = vmatprep.subr.mxu0 0.0
    %81 = vmatpush1.msra.mxu0 0.0
    %82 = vmatprep.subr.mxu0 0.0
    %83 = vmatpush1.msra.mxu0 0.0
    %84 = vmatprep.subr.mxu0 0.0
    %85 = vmatpush1.msra.mxu0 0.0
    %86 = vmatprep.subr.mxu0 0.0
    %87 = vmatpush1.msra.mxu0 0.0
    %88 = vmatprep.subr.mxu0 0.0
    %89 = vmatpush1.msra.mxu0 0.0
    %90 = vmatprep.subr.mxu0 0.0
    %91 = vmatpush1.msra.mxu0 0.0
    %92 = vmatprep.subr.mxu0 0.0
    %93 = vmatpush1.msra.mxu0 0.0
    %94 = vmatprep.subr.mxu0 0.0
    %95 = vmatpush1.msra.mxu0 0.0
    %96 = vmatprep.subr.mxu0 0.0
    %97 = vmatpush1.msra.mxu0 0.0
    %98 = vmatprep.subr.mxu0 0.0
    %99 = vmatpush1.msra.mxu0 0.0
    %100 = vmatprep.subr.mxu0 0.0
    %101 = vmatpush1.msra.mxu0 0.0
    %102 = vmatprep.subr.mxu0 0.0
    %103 = vmatpush1.msra.mxu0 0.0
    %104 = vmatprep.subr.mxu0 0.0
    %105 = vmatpush1.msra.mxu0 0.0
    %106 = vmatprep.subr.mxu0 0.0
    %107 = vmatpush1.msra.mxu0 0.0
    %108 = vmatprep.mubr.f32.mxu0 0.0
    %109 = vmatmul.mubr.f32.gmra.mrb[0].mxu0 %v30
    %v110 = vpop.f32.mrb[0].mxu0
    %v111 = vadd.f32 0.0, %v110
    %v112 = vpop.f32.mrb[0].mxu0
    %v113 = vadd.f32 0.0, %v112
    %114 = vmatprep.mubr.f32.mxu0 0.0
    %115 = vmatmul.mubr.f32.gmra.mrb[0].mxu0 %v33
    %v116 = vpop.f32.mrb[0].mxu0
    %v117 = vadd.f32 0.0, %v116
    %v118 = vpop.f32.mrb[0].mxu0
    %v119 = vadd.f32 0.0, %v118
    %120 = vdwg.mxu0
    %121 = vmatprep.subr.mxu0 %v42
    %122 = vmatpush1.msra.mxu0 %v40
    %123 = vmatprep.subr.mxu0 0.0
    %124 = vmatpush1.msra.mxu0 0.0
    %125 = vmatprep.subr.mxu0 0.0
    %126 = vmatpush1.msra.mxu0 0.0
    %127 = vmatprep.subr.mxu0 0.0
    %128 = vmatpush1.msra.mxu0 0.0
    %129 = vmatprep.subr.mxu0 0.0
    %130 = vmatpush1.msra.mxu0 0.0
    %131 = vmatprep.subr.mxu0 0.0
    %132 = vmatpush1.msra.mxu0 0.0
    %133 = vmatprep.subr.mxu0 0.0
    %134 = vmatpush1.msra.mxu0 0.0
    %135 = vmatprep.subr.mxu0 0.0
    %136 = vmatpush1.msra.mxu0 0.0
    %137 = vmatprep.subr.mxu0 0.0
    %138 = vmatpush1.msra.mxu0 0.0
    %139 = vmatprep.subr.mxu0 0.0
    %140 = vmatpush1.msra.mxu0 0.0
    %141 = vmatprep.subr.mxu0 0.0
    %142 = vmatpush1.msra.mxu0 0.0
    %143 = vmatprep.subr.mxu0 0.0
    %144 = vmatpush1.msra.mxu0 0.0
    %145 = vmatprep.subr.mxu0 0.0
    %146 = vmatpush1.msra.mxu0 0.0
    %147 = vmatprep.subr.mxu0 0.0
    %148 = vmatpush1.msra.mxu0 0.0
    %149 = vmatprep.subr.mxu0 0.0
    %150 = vmatpush1.msra.mxu0 0.0
    %151 = vmatprep.subr.mxu0 0.0
    %152 = vmatpush1.msra.mxu0 0.0
    %153 = vmatprep.subr.mxu0 0.0
    %154 = vmatpush1.msra.mxu0 0.0
    %155 = vmatprep.subr.mxu0 0.0
    %156 = vmatpush1.msra.mxu0 0.0
    %157 = vmatprep.subr.mxu0 0.0
    %158 = vmatpush1.msra.mxu0 0.0
    %159 = vmatprep.subr.mxu0 0.0
    %160 = vmatpush1.msra.mxu0 0.0
    %161 = vmatprep.subr.mxu0 0.0
    %162 = vmatpush1.msra.mxu0 0.0
    %163 = vmatprep.subr.mxu0 0.0
    %164 = vmatpush1.msra.mxu0 0.0
    %165 = vmatprep.subr.mxu0 0.0
    %166 = vmatpush1.msra.mxu0 0.0
    %167 = vmatprep.subr.mxu0 0.0
    %168 = vmatpush1.msra.mxu0 0.0
    %169 = vmatprep.subr.mxu0 0.0
    %170 = vmatpush1.msra.mxu0 0.0
    %171 = vmatprep.subr.mxu0 0.0
    %172 = vmatpush1.msra.mxu0 0.0
    %173 = vmatprep.subr.mxu0 0.0
    %174 = vmatpush1.msra.mxu0 0.0
    %175 = vmatprep.subr.mxu0 0.0
    %176 = vmatpush1.msra.mxu0 0.0
    %177 = vmatprep.subr.mxu0 0.0
    %178 = vmatpush1.msra.mxu0 0.0
    %179 = vmatprep.subr.mxu0 0.0
    %180 = vmatpush1.msra.mxu0 0.0
    %181 = vmatprep.subr.mxu0 0.0
    %182 = vmatpush1.msra.mxu0 0.0
    %183 = vmatprep.subr.mxu0 0.0
    %184 = vmatpush1.msra.mxu0 0.0
    %185 = vmatprep.mubr.f32.mxu0 0.0
    %186 = vmatmul.mubr.f32.gmra.mrb[0].mxu0 %v30
    %v187 = vpop.f32.mrb[0].mxu0
    %v188 = vadd.f32 0.0, %v187
    %v189 = vpop.f32.mrb[0].mxu0
    %v190 = vadd.f32 0.0, %v189
    %191 = vmatprep.mubr.f32.mxu0 0.0
    %192 = vmatmul.mubr.f32.gmra.mrb[0].mxu0 %v33
    %v193 = vpop.f32.mrb[0].mxu0
    %v194 = vadd.f32 0.0, %v193
    %v195 = vpop.f32.mrb[0].mxu0
    %v196 = vadd.f32 0.0, %v195
    %197 = vdwg.mxu0
    %v198 = vadd.f32 %v111, %v113
    %v199 = vadd.f32 %v198, %v188
    %v200 = vadd.f32 %v199, %v190
    %201 = vadd.xlane.f32.xlu0 %v200
    %v202 = vpop.xlane.xlu0 %201
    %v203 = vadd.f32 %v117, %v119
    %v204 = vadd.f32 %v203, %v194
    %v205 = vadd.f32 %v204, %v196
    %206 = vadd.xlane.f32.xlu0 %v205
    %v207 = vpop.xlane.xlu0 %206
    %v208 = vmul.f32 %v111, %v111
    %v209 = vmul.f32 %v113, %v113
    %v210 = vmul.f32 %v188, %v188
    %v211 = vmul.f32 %v190, %v190
    %v212 = vmul.f32 %v117, %v117
    %v213 = vmul.f32 %v119, %v119
    %v214 = vmul.f32 %v194, %v194
    %v215 = vmul.f32 %v196, %v196
    %v216 = vadd.f32 %v208, %v209
    %v217 = vadd.f32 %v216, %v210
    %v218 = vadd.f32 %v217, %v211
    %219 = vadd.xlane.f32.xlu0 %v218
    %v220 = vpop.xlane.xlu0 %219
    %v221 = vadd.f32 %v212, %v213
    %v222 = vadd.f32 %v221, %v214
    %v223 = vadd.f32 %v222, %v215
    %224 = vadd.xlane.f32.xlu0 %v223
    %v225 = vpop.xlane.xlu0 %224
    %v226 = vmul.f32 %v202, 0.001953125
    %v227 = vmul.f32 %v207, 0.001953125
    %v228 = vmul.f32 %v220, 0.001953125
    %v229 = vmul.f32 %v225, 0.001953125
    %v230 = vmul.f32 %v226, %v226
    %v231 = vmul.f32 %v227, %v227
    %v232 = vsub.f32 %v228, %v230
    %v233 = vsub.f32 %v229, %v231
    %v234 = vmax.f32 %v232, 0.0
    %v235 = vmax.f32 %v233, 0.0
    %v236 = vadd.f32 %v234, 1e-05
    %v237 = vadd.f32 %v235, 1e-05
    %v238 = vrsqrt.pop %v236
    %v239 = vrsqrt.pop %v237
    %v240 = vmul.f32 %v20, %v238
    %v241 = vmul.f32 %v21, %v239
    %v242 = vmul.f32 %v226, %v240
    %v243 = vmul.f32 %v227, %v241
    %246 = vrot.lane.b32.xlu0 %v242, 1
    %v247 = vpop.permute.xlu0 %246
    %248 = vrot.lane.b32.xlu0 %v243, 1
    %v249 = vpop.permute.xlu0 %248
    %v252 = vsub.f32 %v20, %v247
    %v253 = vsub.f32 %v21, %v249
    %255 = vset.pattern.permute.xlu0 0
    %256 = vperm.xlu0 %255, %v240
    %v257 = vpop.permute.xlu0 %256
    %260 = vset.pattern.permute.xlu0 0
    %261 = vperm.xlu0 %260, %v241
    %v262 = vpop.permute.xlu0 %261
    %v264 = vmul.f32 %v111, %v257
    %v265 = vmul.f32 %v113, %v257
    %v266 = vmul.f32 %v188, %v257
    %v267 = vmul.f32 %v190, %v257
    %v268 = vmul.f32 %v117, %v262
    %v269 = vmul.f32 %v119, %v262
    %v270 = vmul.f32 %v194, %v262
    %v271 = vmul.f32 %v196, %v262
    %273 = vset.pattern.permute.xlu0 1
    %274 = vperm.xlu0 %273, %v252
    %v275 = vpop.permute.xlu0 %274
    %278 = vset.pattern.permute.xlu0 1
    %279 = vperm.xlu0 %278, %v253
    %v280 = vpop.permute.xlu0 %279
    %v282 = vadd.f32 %v264, %v275
    %v283 = vadd.f32 %v265, %v275
    %v284 = vadd.f32 %v266, %v275
    %v285 = vadd.f32 %v267, %v275
    %v286 = vadd.f32 %v268, %v280
    %v287 = vadd.f32 %v269, %v280
    %v288 = vadd.f32 %v270, %v280
    %v289 = vadd.f32 %v271, %v280
    %v290 = vmax.f32 %v282, 0.0
    %v291 = vmax.f32 %v283, 0.0
    %v292 = vmax.f32 %v284, 0.0
    %v293 = vmax.f32 %v285, 0.0
    %v294 = vld [vmem:[%s2] sm:$0xff]
    %vm295 = vcmask 64512
    %v297 = vsel %vm295, %v294, 0
    %299 = vmatprep.subr.mxu0 %v291
    %300 = vmatpush1.msra.mxu0 %v290
    %301 = vmatprep.subr.mxu0 0.0
    %302 = vmatpush1.msra.mxu0 0.0
    %303 = vmatprep.subr.mxu0 0.0
    %304 = vmatpush1.msra.mxu0 0.0
    %305 = vmatprep.subr.mxu0 0.0
    %306 = vmatpush1.msra.mxu0 0.0
    %307 = vmatprep.subr.mxu0 0.0
    %308 = vmatpush1.msra.mxu0 0.0
    %309 = vmatprep.subr.mxu0 0.0
    %310 = vmatpush1.msra.mxu0 0.0
    %311 = vmatprep.subr.mxu0 0.0
    %312 = vmatpush1.msra.mxu0 0.0
    %313 = vmatprep.subr.mxu0 0.0
    %314 = vmatpush1.msra.mxu0 0.0
    %315 = vmatprep.subr.mxu0 0.0
    %316 = vmatpush1.msra.mxu0 0.0
    %317 = vmatprep.subr.mxu0 0.0
    %318 = vmatpush1.msra.mxu0 0.0
    %319 = vmatprep.subr.mxu0 0.0
    %320 = vmatpush1.msra.mxu0 0.0
    %321 = vmatprep.subr.mxu0 0.0
    %322 = vmatpush1.msra.mxu0 0.0
    %323 = vmatprep.subr.mxu0 0.0
    %324 = vmatpush1.msra.mxu0 0.0
    %325 = vmatprep.subr.mxu0 0.0
    %326 = vmatpush1.msra.mxu0 0.0
    %327 = vmatprep.subr.mxu0 0.0
    %328 = vmatpush1.msra.mxu0 0.0
    %329 = vmatprep.subr.mxu0 0.0
    %330 = vmatpush1.msra.mxu0 0.0
    %331 = vmatprep.subr.mxu0 0.0
    %332 = vmatpush1.msra.mxu0 0.0
    %333 = vmatprep.subr.mxu0 0.0
    %334 = vmatpush1.msra.mxu0 0.0
    %335 = vmatprep.subr.mxu0 0.0
    %336 = vmatpush1.msra.mxu0 0.0
    %337 = vmatprep.subr.mxu0 0.0
    %338 = vmatpush1.msra.mxu0 0.0
    %339 = vmatprep.subr.mxu0 0.0
    %340 = vmatpush1.msra.mxu0 0.0
    %341 = vmatprep.subr.mxu0 0.0
    %342 = vmatpush1.msra.mxu0 0.0
    %343 = vmatprep.subr.mxu0 0.0
    %344 = vmatpush1.msra.mxu0 0.0
    %345 = vmatprep.subr.mxu0 0.0
    %346 = vmatpush1.msra.mxu0 0.0
    %347 = vmatprep.subr.mxu0 0.0
    %348 = vmatpush1.msra.mxu0 0.0
    %349 = vmatprep.subr.mxu0 0.0
    %350 = vmatpush1.msra.mxu0 0.0
    %351 = vmatprep.subr.mxu0 0.0
    %352 = vmatpush1.msra.mxu0 0.0
    %353 = vmatprep.subr.mxu0 0.0
    %354 = vmatpush1.msra.mxu0 0.0
    %355 = vmatprep.subr.mxu0 0.0
    %356 = vmatpush1.msra.mxu0 0.0
    %357 = vmatprep.subr.mxu0 0.0
    %358 = vmatpush1.msra.mxu0 0.0
    %359 = vmatprep.subr.mxu0 0.0
    %360 = vmatpush1.msra.mxu0 0.0
    %361 = vmatprep.subr.mxu0 0.0
    %362 = vmatpush1.msra.mxu0 0.0
    %363 = vmatprep.mubr.f32.mxu0 0.0
    %364 = vmatmul.mubr.f32.gmra.mrb[0].mxu0 %v297
    %v365 = vpop.f32.mrb[0].mxu0
    %v366 = vadd.f32 0.0, %v365
    %v367 = vpop.f32.mrb[0].mxu0
    %v368 = vadd.f32 0.0, %v367
    %369 = vdwg.mxu0
    %370 = vmatprep.subr.mxu0 %v293
    %371 = vmatpush1.msra.mxu0 %v292
    %372 = vmatprep.subr.mxu0 0.0
    %373 = vmatpush1.msra.mxu0 0.0
    %374 = vmatprep.subr.mxu0 0.0
    %375 = vmatpush1.msra.mxu0 0.0
    %376 = vmatprep.subr.mxu0 0.0
    %377 = vmatpush1.msra.mxu0 0.0
    %378 = vmatprep.subr.mxu0 0.0
    %379 = vmatpush1.msra.mxu0 0.0
    %380 = vmatprep.subr.mxu0 0.0
    %381 = vmatpush1.msra.mxu0 0.0
    %382 = vmatprep.subr.mxu0 0.0
    %383 = vmatpush1.msra.mxu0 0.0
    %384 = vmatprep.subr.mxu0 0.0
    %385 = vmatpush1.msra.mxu0 0.0
    %386 = vmatprep.subr.mxu0 0.0
    %387 = vmatpush1.msra.mxu0 0.0
    %388 = vmatprep.subr.mxu0 0.0
    %389 = vmatpush1.msra.mxu0 0.0
    %390 = vmatprep.subr.mxu0 0.0
    %391 = vmatpush1.msra.mxu0 0.0
    %392 = vmatprep.subr.mxu0 0.0
    %393 = vmatpush1.msra.mxu0 0.0
    %394 = vmatprep.subr.mxu0 0.0
    %395 = vmatpush1.msra.mxu0 0.0
    %396 = vmatprep.subr.mxu0 0.0
    %397 = vmatpush1.msra.mxu0 0.0
    %398 = vmatprep.subr.mxu0 0.0
    %399 = vmatpush1.msra.mxu0 0.0
    %400 = vmatprep.subr.mxu0 0.0
    %401 = vmatpush1.msra.mxu0 0.0
    %402 = vmatprep.subr.mxu0 0.0
    %403 = vmatpush1.msra.mxu0 0.0
    %404 = vmatprep.subr.mxu0 0.0
    %405 = vmatpush1.msra.mxu0 0.0
    %406 = vmatprep.subr.mxu0 0.0
    %407 = vmatpush1.msra.mxu0 0.0
    %408 = vmatprep.subr.mxu0 0.0
    %409 = vmatpush1.msra.mxu0 0.0
    %410 = vmatprep.subr.mxu0 0.0
    %411 = vmatpush1.msra.mxu0 0.0
    %412 = vmatprep.subr.mxu0 0.0
    %413 = vmatpush1.msra.mxu0 0.0
    %414 = vmatprep.subr.mxu0 0.0
    %415 = vmatpush1.msra.mxu0 0.0
    %416 = vmatprep.subr.mxu0 0.0
    %417 = vmatpush1.msra.mxu0 0.0
    %418 = vmatprep.subr.mxu0 0.0
    %419 = vmatpush1.msra.mxu0 0.0
    %420 = vmatprep.subr.mxu0 0.0
    %421 = vmatpush1.msra.mxu0 0.0
    %422 = vmatprep.subr.mxu0 0.0
    %423 = vmatpush1.msra.mxu0 0.0
    %424 = vmatprep.subr.mxu0 0.0
    %425 = vmatpush1.msra.mxu0 0.0
    %426 = vmatprep.subr.mxu0 0.0
    %427 = vmatpush1.msra.mxu0 0.0
    %428 = vmatprep.subr.mxu0 0.0
    %429 = vmatpush1.msra.mxu0 0.0
    %430 = vmatprep.subr.mxu0 0.0
    %431 = vmatpush1.msra.mxu0 0.0
    %432 = vmatprep.subr.mxu0 0.0
    %433 = vmatpush1.msra.mxu0 0.0
    %434 = vmatprep.mubr.f32.mxu0 0.0
    %435 = vmatmul.mubr.f32.gmra.mrb[0].mxu0 %v297
    %v436 = vpop.f32.mrb[0].mxu0
    %v437 = vadd.f32 0.0, %v436
    %v438 = vpop.f32.mrb[0].mxu0
    %v439 = vadd.f32 0.0, %v438
    %440 = vdwg.mxu0
    %v441 = vadd.f32 %v366, %v368
    %v442 = vadd.f32 %v441, %v437
    %v443 = vadd.f32 %v442, %v439
    %444 = vadd.xlane.f32.xlu0 %v443
    %v445 = vpop.xlane.xlu0 %444
    %v446 = vmul.f32 %v366, %v366
    %v447 = vmul.f32 %v368, %v368
    %v448 = vmul.f32 %v437, %v437
    %v449 = vmul.f32 %v439, %v439
    %v450 = vadd.f32 %v446, %v447
    %v451 = vadd.f32 %v450, %v448
    %v452 = vadd.f32 %v451, %v449
    %453 = vadd.xlane.f32.xlu0 %v452
    %v454 = vpop.xlane.xlu0 %453
    %v455 = vmul.f32 %v445, 0.001953125
    %v456 = vmul.f32 %v454, 0.001953125
    %v457 = vmul.f32 %v455, %v455
    %v458 = vsub.f32 %v456, %v457
    %v459 = vmax.f32 %v458, 0.0
    %v460 = vadd.f32 %v459, 1e-05
    %v461 = vrsqrt.pop %v460
    %v462 = vmul.f32 %v20, %v461
    %v463 = vmul.f32 %v455, %v462
    %465 = vrot.lane.b32.xlu0 %v463, 1
    %v466 = vpop.permute.xlu0 %465
    %v468 = vsub.f32 %v20, %v466
    %470 = vset.pattern.permute.xlu0 2
    %471 = vperm.xlu0 %470, %v462
    %v472 = vpop.permute.xlu0 %471
    %v474 = vmul.f32 %v366, %v472
    %v475 = vmul.f32 %v368, %v472
    %v476 = vmul.f32 %v437, %v472
    %v477 = vmul.f32 %v439, %v472
    %479 = vset.pattern.permute.xlu0 3
    %480 = vperm.xlu0 %479, %v468
    %v481 = vpop.permute.xlu0 %480
    %v483 = vadd.f32 %v474, %v481
    %v484 = vadd.f32 %v475, %v481
    %v485 = vadd.f32 %v476, %v481
    %v486 = vadd.f32 %v477, %v481
    %v487 = vadd.f32 %v483, %v286
    %v488 = vadd.f32 %v484, %v287
    %v489 = vadd.f32 %v485, %v288
    %v490 = vadd.f32 %v486, %v289
    %v491 = vmax.f32 %v487, 0.0
    %v492 = vmax.f32 %v488, 0.0
    %v493 = vmax.f32 %v489, 0.0
    %v494 = vmax.f32 %v490, 0.0
    %495 = vst [vmem:[#allocation2] sm:$0xff] %v491
    %496 = vst [vmem:[#allocation2 + $0x8] sm:$0xff] %v492
    %497 = vst [vmem:[#allocation2 + $0x10] sm:$0xff] %v493
    %498 = vst [vmem:[#allocation2 + $0x18] sm:$0xff] %v494
    // Predicated region
    $region18: #{tpu_custom_call.1} parent=1 // pred_check
      _
    $region19: #{tpu_custom_call.1} parent=1 // pred_check_branch
      %500 = sbr.rel (0) target = $region21
    $region20: #{tpu_custom_call.1} parent=1 // pred_region
      %s502 = ssub.s32 512, 512
      %503 = vsyncadd [#allocation3], %s502
      %s505 = sshll.u32 [#allocation2], 4
      %s506 = int_to_ptr.vmem [resolvable:$true] %s505
      %508 = dma.vmem_to_hbm [thread:$0]  %s506, 512, %s4, [#allocation3]
    $region21: #{tpu_custom_call.1} parent=1 // pred_fallthru
      _
    // Predicated region
    $region22: #{tpu_custom_call.1} parent=1 // pred_check
      _
    $region23: #{tpu_custom_call.1} parent=1 // pred_check_branch
      %510 = sbr.rel (0) target = $region25
    $region24: #{tpu_custom_call.1} parent=1 // pred_region
      %511 = dma.done [#allocation3], 512
    $region25: #{tpu_custom_call.1} parent=1 // pred_fallthru
      _
    %512 = vsyncpa [#allocation3], 1

</llo_original>
